<compile_context>
chip_gen: v5e
topology: v5e:2x2
jax: 0.10.0
libtpu: 0.0.40
codegen_flags: <defaults>
</compile_context>

<pallas_src>
import functools

import jax
import jax.numpy as jnp
from jax.experimental import pallas as pl
from jax.experimental.pallas import tpu as pltpu

LANES = 128
SUBLANES = 8
EPS = 0.0001


def _cdiv(a, b):
    return (a + b - 1) // b


def _round_up(v, m):
    return _cdiv(v, m) * m


def _dice_partial_kernel(x_ref, y_ref, o_ref, *, row_tile, blocks_per_split,
                         valid_rows, last_lanes, needs_mask):
    s = pl.program_id(0)   # TensorCore split (parallel)
    i = pl.program_id(1)   # row-block within the split (arbitrary / reduction)

    @pl.when(i == 0)
    def _init():
        o_ref[...] = jnp.zeros_like(o_ref)

    x = x_ref[...].astype(jnp.float32)
    y = y_ref[...].astype(jnp.float32)

    if needs_mask:
        # Mask the ragged tail / duplicate (clamped) blocks using the logical
        # (unclamped) block index so garbage rows contribute exactly zero.
        logical_block = s * blocks_per_split + i
        row0 = logical_block * row_tile
        grow = row0 + jax.lax.broadcasted_iota(jnp.int32, (row_tile, LANES), 0)
        lane = jax.lax.broadcasted_iota(jnp.int32, (row_tile, LANES), 1)
        valid = (grow < valid_rows - 1) | (
            (grow == valid_rows - 1) & (lane < last_lanes))
        zero = jnp.zeros((), jnp.float32)
        x = jnp.where(valid, x, zero)
        y = jnp.where(valid, y, zero)

    # Vreg-shaped partial sums: reduce (row_tile,128) -> (8,128) with pure
    # vector adds (no XLU cross-lane reduce in the hot loop).
    def _part(v):
        return v.reshape(row_tile // SUBLANES, SUBLANES, LANES).sum(axis=0)

    o_ref[0, 0] += _part(x * y)
    o_ref[0, 1] += _part(x * x)
    o_ref[0, 2] += _part(y * y)


def dice_loss(x, y, *, tile_rows=2048, num_splits=2):
    """1 - dice_coef(x, y), matching the PyTorch Diceloss.forward semantics."""
    assert x.shape == y.shape
    batch_len = float(y.shape[0])  # float(len(y)) in the torch code

    n = x.size
    itemsize = jnp.dtype(x.dtype).itemsize
    sub_mult = max(SUBLANES, 32 // max(itemsize, 1))  # 8 f32 / 16 bf16 / 32 i8

    # Only pad to a multiple of 128 lanes (needed for the 2-D view); when the
    # element count is already a multiple of 128 this is a free reshape.
    pad = (-n) % LANES
    if pad:
        xf = jnp.pad(jnp.ravel(x), (0, pad))
        yf = jnp.pad(jnp.ravel(y), (0, pad))
    else:
        xf = jnp.ravel(x)
        yf = jnp.ravel(y)
    rows = (n + pad) // LANES
    x2d = xf.reshape(rows, LANES)
    y2d = yf.reshape(rows, LANES)

    # Row tile: large (HBM-streaming) but clamped to the array, multiple of the
    # dtype's sublane packing.
    row_tile = min(tile_rows, _round_up(rows, sub_mult))
    row_tile = max(sub_mult, (row_tile // sub_mult) * sub_mult)

    n_row_blocks = _cdiv(rows, row_tile)
    splits = max(1, int(num_splits))
    blocks_per_split = _cdiv(n_row_blocks, splits)
    max_block = n_row_blocks - 1

    valid_rows = _cdiv(n, LANES)
    last_lanes = n - (valid_rows - 1) * LANES
    covered = splits * blocks_per_split * row_tile * LANES
    needs_mask = covered != n  # tail, pad, or duplicate (clamped) blocks exist

    kernel = functools.partial(
        _dice_partial_kernel,
        row_tile=row_tile,
        blocks_per_split=blocks_per_split,
        valid_rows=valid_rows,
        last_lanes=last_lanes,
        needs_mask=needs_mask,
    )

    def in_map(s, i):
        # Clamp so the generated DMA never walks past the array; the in-kernel
        # mask (keyed on the unclamped logical block) zeroes any duplicate.
        return (jnp.minimum(s * blocks_per_split + i, max_block), 0)

    partials = pl.pallas_call(
        kernel,
        out_shape=jax.ShapeDtypeStruct((splits, 3, SUBLANES, LANES),
                                       jnp.float32),
        grid_spec=pltpu.PrefetchScalarGridSpec(
            num_scalar_prefetch=0,
            grid=(splits, blocks_per_split),
            in_specs=[
                pl.BlockSpec((row_tile, LANES), in_map),
                pl.BlockSpec((row_tile, LANES), in_map),
            ],
            out_specs=pl.BlockSpec((1, 3, SUBLANES, LANES),
                                   lambda s, i: (s, 0, 0, 0)),
        ),
        compiler_params=pltpu.CompilerParams(
            dimension_semantics=("parallel", "arbitrary"),
        ),
    )(x2d, y2d)

    # Tiny final combine in plain JAX (2 * 3 * 8 * 128 floats).
    sums = jnp.sum(partials, axis=(0, 2, 3))  # [sum(x*y), sum(x^2), sum(y^2)]
    sxy, sxx, syy = sums[0], sums[1], sums[2]
    dice = (2.0 * sxy + EPS) / (sxx + syy + EPS) / batch_len
    return 1.0 - dice


def dice_loss_ref(x, y):
    xf = x.astype(jnp.float32)
    yf = y.astype(jnp.float32)
    numerator = 2.0 * jnp.sum(xf * yf) + EPS
    denominator = jnp.sum(xf * xf) + jnp.sum(yf * yf) + EPS
    return 1.0 - numerator / denominator / float(y.shape[0])


if __name__ == "__main__":
    key = jax.random.PRNGKey(0)
    kx, ky = jax.random.split(key)

    # NCHW-style inputs: batch=2, channels=4, spatial=16x16 (nicely sized path)
    x = jax.random.uniform(kx, (2, 4, 16, 16), dtype=jnp.float32)
    y = (jax.random.uniform(ky, (2, 4, 16, 16), dtype=jnp.float32) > 0.5
         ).astype(jnp.float32)
    out = jax.block_until_ready(dice_loss(x, y))
    ref = dice_loss_ref(x, y)
    assert jnp.allclose(out, ref, rtol=1e-5, atol=1e-6), (out, ref)

    # Ragged shape to exercise the masked-tail / partial-block path.
    x2 = jax.random.uniform(kx, (3, 5, 33, 17), dtype=jnp.float32)
    y2 = (jax.random.uniform(ky, (3, 5, 33, 17), dtype=jnp.float32) > 0.5
          ).astype(jnp.float32)
    out2 = jax.block_until_ready(dice_loss(x2, y2))
    ref2 = dice_loss_ref(x2, y2)
    assert jnp.allclose(out2, ref2, rtol=1e-5, atol=1e-6), (out2, ref2)

    print("KERNEL_OK")
</pallas_src>

<mosaic_0001>
module attributes {stable_mosaic.version = 11 : i64} {
  func.func @_dice_partial_kernel(%arg0: i32, %arg1: i32, %arg2: memref<16x128xf32, #tpu.memory_space<vmem>>, %arg3: memref<16x128xf32, #tpu.memory_space<vmem>>, %arg4: memref<1x3x8x128xf32, #tpu.memory_space<vmem>>) attributes {dimension_semantics = [#tpu.dimension_semantics<parallel>, #tpu.dimension_semantics<arbitrary>], iteration_bounds = array<i64: 2, 1>, scalar_prefetch = 0 : i64, scratch_operands = 0 : i64, tpu.core_type = #tpu.core_type<tc>, window_params = [{transform_indices = @transform_0, window_bounds = array<i64: 16, 128>}, {transform_indices = @transform_1, window_bounds = array<i64: 16, 128>}, {transform_indices = @transform_2, window_bounds = array<i64: 1, 3, 8, 128>}]} {
    %c0_i32 = arith.constant 0 : i32
    %0 = arith.cmpi eq, %arg1, %c0_i32 : i32
    %1 = arith.extui %0 : i1 to i32
    %c0_i32_0 = arith.constant 0 : i32
    %2 = arith.cmpi ne, %1, %c0_i32_0 : i32
    scf.if %2 {
      %cst_31 = arith.constant 0.000000e+00 : f32
      %51 = vector.broadcast %cst_31 : f32 to vector<1x3x8x128xf32>
      %c0_32 = arith.constant 0 : index
      %c0_33 = arith.constant 0 : index
      %c0_34 = arith.constant 0 : index
      %c0_35 = arith.constant 0 : index
      %52 = vector.load %arg4[%c0_32, %c0_33, %c0_34, %c0_35] : memref<1x3x8x128xf32, #tpu.memory_space<vmem>>, vector<1x3x8x128xf32>
      tpu.vector_store %arg4[%c0_32, %c0_33, %c0_34, %c0_35], %51 {strides = array<i32>} : memref<1x3x8x128xf32, #tpu.memory_space<vmem>>, vector<1x3x8x128xf32>,
    } else {
    }
    %c0 = arith.constant 0 : index
    %c0_1 = arith.constant 0 : index
    %3 = vector.load %arg2[%c0, %c0_1] : memref<16x128xf32, #tpu.memory_space<vmem>>, vector<16x128xf32>
    %c0_2 = arith.constant 0 : index
    %c0_3 = arith.constant 0 : index
    %4 = vector.load %arg3[%c0_2, %c0_3] : memref<16x128xf32, #tpu.memory_space<vmem>>, vector<16x128xf32>
    %c1_i32 = arith.constant 1 : i32
    %5 = arith.muli %arg0, %c1_i32 : i32
    %6 = arith.addi %5, %arg1 : i32
    %c16_i32 = arith.constant 16 : i32
    %7 = arith.muli %6, %c16_i32 : i32
    %8 = tpu.iota {dimensions = array<i32: 0>} : vector<16x128xi32>
    %9 = vector.broadcast %7 : i32 to vector<16x128xi32>
    %10 = arith.addi %9, %8 : vector<16x128xi32>
    %11 = tpu.iota {dimensions = array<i32: 1>} : vector<16x128xi32>
    %c15_i32 = arith.constant 15 : i32
    %12 = vector.broadcast %c15_i32 : i32 to vector<16x128xi32>
    %13 = arith.cmpi slt, %10, %12 : vector<16x128xi32>
    %c15_i32_4 = arith.constant 15 : i32
    %14 = vector.broadcast %c15_i32_4 : i32 to vector<16x128xi32>
    %15 = arith.cmpi eq, %10, %14 : vector<16x128xi32>
    %c128_i32 = arith.constant 128 : i32
    %16 = vector.broadcast %c128_i32 : i32 to vector<16x128xi32>
    %17 = arith.cmpi slt, %11, %16 : vector<16x128xi32>
    %18 = arith.andi %15, %17 : vector<16x128xi1>
    %19 = arith.ori %13, %18 : vector<16x128xi1>
    %cst = arith.constant 0.000000e+00 : f32
    %20 = vector.broadcast %cst : f32 to vector<16x128xf32>
    %21 = arith.select %19, %3, %20 : vector<16x128xi1>, vector<16x128xf32>
    %cst_5 = arith.constant 0.000000e+00 : f32
    %22 = vector.broadcast %cst_5 : f32 to vector<16x128xf32>
    %23 = arith.select %19, %4, %22 : vector<16x128xi1>, vector<16x128xf32>
    %c0_6 = arith.constant 0 : index
    %c0_7 = arith.constant 0 : index
    %c0_8 = arith.constant 0 : index
    %c0_9 = arith.constant 0 : index
    %24 = vector.load %arg4[%c0_6, %c0_7, %c0_8, %c0_9] : memref<1x3x8x128xf32, #tpu.memory_space<vmem>>, vector<1x1x8x128xf32>
    %25 = vector.shape_cast %24 : vector<1x1x8x128xf32> to vector<8x128xf32>
    %26 = arith.mulf %21, %23 : vector<16x128xf32>
    %27 = vector.shape_cast %26 : vector<16x128xf32> to vector<2x8x128xf32>
    %cst_10 = arith.constant dense<0.000000e+00> : vector<8x128xf32>
    %28 = vector.multi_reduction <add>, %27, %cst_10 [0] : vector<2x8x128xf32> to vector<8x128xf32>
    %29 = arith.addf %25, %28 : vector<8x128xf32>
    %c0_11 = arith.constant 0 : index
    %c0_12 = arith.constant 0 : index
    %c0_13 = arith.constant 0 : index
    %c0_14 = arith.constant 0 : index
    %30 = vector.load %arg4[%c0_11, %c0_12, %c0_13, %c0_14] : memref<1x3x8x128xf32, #tpu.memory_space<vmem>>, vector<1x1x8x128xf32>
    %31 = vector.shape_cast %30 : vector<1x1x8x128xf32> to vector<8x128xf32>
    %32 = vector.shape_cast %29 : vector<8x128xf32> to vector<1x1x8x128xf32>
    tpu.vector_store %arg4[%c0_11, %c0_12, %c0_13, %c0_14], %32 {strides = array<i32>} : memref<1x3x8x128xf32, #tpu.memory_space<vmem>>, vector<1x1x8x128xf32>,
    %c0_15 = arith.constant 0 : index
    %c1 = arith.constant 1 : index
    %c0_16 = arith.constant 0 : index
    %c0_17 = arith.constant 0 : index
    %33 = vector.load %arg4[%c0_15, %c1, %c0_16, %c0_17] : memref<1x3x8x128xf32, #tpu.memory_space<vmem>>, vector<1x1x8x128xf32>
    %34 = vector.shape_cast %33 : vector<1x1x8x128xf32> to vector<8x128xf32>
    %35 = arith.mulf %21, %21 : vector<16x128xf32>
    %36 = vector.shape_cast %35 : vector<16x128xf32> to vector<2x8x128xf32>
    %cst_18 = arith.constant dense<0.000000e+00> : vector<8x128xf32>
    %37 = vector.multi_reduction <add>, %36, %cst_18 [0] : vector<2x8x128xf32> to vector<8x128xf32>
    %38 = arith.addf %34, %37 : vector<8x128xf32>
    %c0_19 = arith.constant 0 : index
    %c1_20 = arith.constant 1 : index
    %c0_21 = arith.constant 0 : index
    %c0_22 = arith.constant 0 : index
    %39 = vector.load %arg4[%c0_19, %c1_20, %c0_21, %c0_22] : memref<1x3x8x128xf32, #tpu.memory_space<vmem>>, vector<1x1x8x128xf32>
    %40 = vector.shape_cast %39 : vector<1x1x8x128xf32> to vector<8x128xf32>
    %41 = vector.shape_cast %38 : vector<8x128xf32> to vector<1x1x8x128xf32>
    tpu.vector_store %arg4[%c0_19, %c1_20, %c0_21, %c0_22], %41 {strides = array<i32>} : memref<1x3x8x128xf32, #tpu.memory_space<vmem>>, vector<1x1x8x128xf32>,
    %c0_23 = arith.constant 0 : index
    %c2 = arith.constant 2 : index
    %c0_24 = arith.constant 0 : index
    %c0_25 = arith.constant 0 : index
    %42 = vector.load %arg4[%c0_23, %c2, %c0_24, %c0_25] : memref<1x3x8x128xf32, #tpu.memory_space<vmem>>, vector<1x1x8x128xf32>
    %43 = vector.shape_cast %42 : vector<1x1x8x128xf32> to vector<8x128xf32>
    %44 = arith.mulf %23, %23 : vector<16x128xf32>
    %45 = vector.shape_cast %44 : vector<16x128xf32> to vector<2x8x128xf32>
    %cst_26 = arith.constant dense<0.000000e+00> : vector<8x128xf32>
    %46 = vector.multi_reduction <add>, %45, %cst_26 [0] : vector<2x8x128xf32> to vector<8x128xf32>
    %47 = arith.addf %43, %46 : vector<8x128xf32>
    %c0_27 = arith.constant 0 : index
    %c2_28 = arith.constant 2 : index
    %c0_29 = arith.constant 0 : index
    %c0_30 = arith.constant 0 : index
    %48 = vector.load %arg4[%c0_27, %c2_28, %c0_29, %c0_30] : memref<1x3x8x128xf32, #tpu.memory_space<vmem>>, vector<1x1x8x128xf32>
    %49 = vector.shape_cast %48 : vector<1x1x8x128xf32> to vector<8x128xf32>
    %50 = vector.shape_cast %47 : vector<8x128xf32> to vector<1x1x8x128xf32>
    tpu.vector_store %arg4[%c0_27, %c2_28, %c0_29, %c0_30], %50 {strides = array<i32>} : memref<1x3x8x128xf32, #tpu.memory_space<vmem>>, vector<1x1x8x128xf32>,
    return
  }
  func.func @transform_0(%arg0: i32, %arg1: i32) -> (i32, i32) {
    %c1_i32 = arith.constant 1 : i32
    %0 = arith.muli %arg0, %c1_i32 : i32
    %1 = arith.addi %0, %arg1 : i32
    %c0_i32 = arith.constant 0 : i32
    %2 = arith.minsi %1, %c0_i32 : i32
    %c0_i32_0 = arith.constant 0 : i32
    %c0_i32_1 = arith.constant 0 : i32
    return %2, %c0_i32_0 : i32, i32
  }
  func.func @transform_1(%arg0: i32, %arg1: i32) -> (i32, i32) {
    %c1_i32 = arith.constant 1 : i32
    %0 = arith.muli %arg0, %c1_i32 : i32
    %1 = arith.addi %0, %arg1 : i32
    %c0_i32 = arith.constant 0 : i32
    %2 = arith.minsi %1, %c0_i32 : i32
    %c0_i32_0 = arith.constant 0 : i32
    %c0_i32_1 = arith.constant 0 : i32
    return %2, %c0_i32_0 : i32, i32
  }
  func.func @transform_2(%arg0: i32, %arg1: i32) -> (i32, i32, i32, i32) {
    %c0_i32 = arith.constant 0 : i32
    %c0_i32_0 = arith.constant 0 : i32
    %c0_i32_1 = arith.constant 0 : i32
    %c0_i32_2 = arith.constant 0 : i32
    return %arg0, %c0_i32, %c0_i32_0, %c0_i32_1 : i32, i32, i32, i32
  }
}

</mosaic_0001>

<llo_original>
// kernel: tpu_custom_call.1
$region0: #{tpu_custom_call.1}
  #allocation0 [shape = 'u32[]', space=smem, size = 0x4, offset = 0x4, fixed_abs, tag = 'smem constant byte address 0x4 - core index']
  #allocation1 [shape = 'u32[72,128]{1,0:T(1,128)}', space=vmem, size = 0x9000, scoped, tag = 'internal scratch']
  %s0 = inlined_call_operand.hbm [shape: f32[16,128], index: 0, kind: input, shape index: {}]
  %s1 = inlined_call_operand.hbm [shape: f32[16,128], index: 1, kind: input, shape index: {}]
  %s2 = inlined_call_operand.hbm [shape: f32[2,3,8,128], index: 2, kind: output, shape index: {}]
  %s3 = sld [smem:[#allocation0]]
  $region53: #{tpu_custom_call.1} parent=0
    _
  %s5 = ssub.s32 1, %s3
  %s6 = scalar_select 0, %s5, %s3
  $region1: #{tpu_custom_call.1} parent=0
    #allocation2 [shape = 'u8[16384]{0}', space=vmem, size = 0x4000, scoped, tag = 'input window, operand 0']
    #allocation3 [shape = 's32[2]{0}', space=sflag, size = 0x8, scoped, tag = 'scoped memory for tpu_custom_call.1']
    #allocation4 [shape = 's32[2]{0}', space=sflag, size = 0x8, scoped, tag = 'scoped memory for tpu_custom_call.1']
    #allocation5 [shape = 'u8[16384]{0}', space=vmem, size = 0x4000, scoped, tag = 'input window, operand 1']
    #allocation6 [shape = 's32[2]{0}', space=sflag, size = 0x8, scoped, tag = 'scoped memory for tpu_custom_call.1']
    #allocation7 [shape = 'u8[24576]{0}', space=vmem, size = 0x6000, scoped, tag = 'output window, operand 0']
    %7 = vsyncpa [#allocation3], 0
    %s8 = scalar_lea.sflag [#allocation3], 1
    %9 = vsyncpa %s8, 0
    %10 = vsyncpa [#allocation6], 0
    %s11 = scalar_lea.sflag [#allocation6], 1
    %12 = vsyncpa %s11, 0
    %13 = vsyncpa [#allocation4], 0
    %s14 = scalar_lea.sflag [#allocation4], 1
    %15 = vsyncpa %s14, 0
    loop: start=0, step=1, limit=4
    $region2: #{tpu_custom_call.1} parent=1 // loop_pre_header
      _
    $region3: #{tpu_custom_call.1} parent=1 // loop_header
      %s17 = sphi 0, %s21
      %p18 = scmp.ge.s32.totalorder %s17, 4
      %s24 = sphi 0, %s36
      %s25 = sphi 0, %s32
      %s26 = sphi 0, %s24
      %s27 = sphi 0, %s25
      %s28 = sphi 0, %s26
      %s29 = sphi 0, %s27
      %s45 = sphi 0, %s47
      %s48 = sphi 0, %s45
      %s49 = sphi 0, %s48
      %s65 = sphi 0, %s49
      %s77 = sphi 0, %s79
      %s80 = sphi 0, %s77
      %s81 = sphi 0, %s80
      %s97 = sphi 0, %s81
      %s103 = sphi 0, %s105
      %s106 = sphi 0, %s103
      %s107 = sphi 0, %s106
      %s123 = sphi 0, %s107
    $region4: #{tpu_custom_call.1} parent=1 // loop_header_branch
      %20 = sbr.rel (%p18) target = $region8
    $region5: #{tpu_custom_call.1} parent=1 // loop_body
      %s22 = ssub.s32 %s17, 1
      %s23 = ssub.s32 %s17, 2
      %s30 = sadd.s32 1, %s25
      %p31 = scmp.ge.s32.totalorder %s30, 1
      %s32 = scalar_select %p31, 0, %s30
      %s33 = sadd.s32 1, %s24
      %s34 = scalar_select %p31, %s33, %s24
      %p35 = scmp.ge.s32.totalorder %s34, 2
      %s36 = scalar_select %p35, 0, %s34
      %s37 = sadd.s32 %s24, %s25
      %p38 = scmp.lt.s32.totalorder %s37, 0
      %s39 = scalar_select %p38, %s37, 0
      %s40 = sadd.s32 %s36, %s32
      %p41 = scmp.lt.s32.totalorder %s40, 0
      %s42 = scalar_select %p41, %s40, 0
      %s43 = ssub.s32 %s39, %s42
      %p44 = scmp.eq.s32.totalorder %s43, 0
      %s46 = sadd.s32 %s45, 1
      %s47 = scalar_select %p44, %s45, %s46
      %p50 = pneg %p44
      %p51 = scmp.eq.s32.totalorder %s17, 1
      %p52 = por %p50, %p51
      %p53 = scmp.ne.s32.totalorder %s45, %s48
      %p54 = scmp.eq.s32.totalorder %s17, 0
      %p55 = por %p53, %p54
      %p56 = scmp.ne.s32.totalorder %s45, %s48
      %p57 = scmp.eq.s32.totalorder %s22, 1
      %p58 = por %p56, %p57
      %p59 = scmp.ne.s32.totalorder %s48, %s49
      %p60 = scmp.eq.s32.totalorder %s22, 0
      %p61 = por %p59, %p60
      %p62 = scmp.ne.s32.totalorder %s48, %s49
      %p63 = scmp.eq.s32.totalorder %s23, 1
      %p64 = por %p62, %p63
      %p66 = scmp.ne.s32.totalorder %s49, %s65
      %p67 = scmp.eq.s32.totalorder %s23, 0
      %p68 = por %p66, %p67
      %s69 = sadd.s32 %s24, %s25
      %p70 = scmp.lt.s32.totalorder %s69, 0
      %s71 = scalar_select %p70, %s69, 0
      %s72 = sadd.s32 %s36, %s32
      %p73 = scmp.lt.s32.totalorder %s72, 0
      %s74 = scalar_select %p73, %s72, 0
      %s75 = ssub.s32 %s71, %s74
      %p76 = scmp.eq.s32.totalorder %s75, 0
      %s78 = sadd.s32 %s77, 1
      %s79 = scalar_select %p76, %s77, %s78
      %p82 = pneg %p76
      %p83 = scmp.eq.s32.totalorder %s17, 1
      %p84 = por %p82, %p83
      %p85 = scmp.ne.s32.totalorder %s77, %s80
      %p86 = scmp.eq.s32.totalorder %s17, 0
      %p87 = por %p85, %p86
      %p88 = scmp.ne.s32.totalorder %s77, %s80
      %p89 = scmp.eq.s32.totalorder %s22, 1
      %p90 = por %p88, %p89
      %p91 = scmp.ne.s32.totalorder %s80, %s81
      %p92 = scmp.eq.s32.totalorder %s22, 0
      %p93 = por %p91, %p92
      %p94 = scmp.ne.s32.totalorder %s80, %s81
      %p95 = scmp.eq.s32.totalorder %s23, 1
      %p96 = por %p94, %p95
      %p98 = scmp.ne.s32.totalorder %s81, %s97
      %p99 = scmp.eq.s32.totalorder %s23, 0
      %p100 = por %p98, %p99
      %s101 = ssub.s32 %s24, %s36
      %p102 = scmp.eq.s32.totalorder %s101, 0
      %s104 = sadd.s32 %s103, 1
      %s105 = scalar_select %p102, %s103, %s104
      %p108 = pneg %p102
      %p109 = scmp.eq.s32.totalorder %s17, 1
      %p110 = por %p108, %p109
      %p111 = scmp.ne.s32.totalorder %s103, %s106
      %p112 = scmp.eq.s32.totalorder %s17, 0
      %p113 = por %p111, %p112
      %p114 = scmp.ne.s32.totalorder %s103, %s106
      %p115 = scmp.eq.s32.totalorder %s22, 1
      %p116 = por %p114, %p115
      %p117 = scmp.ne.s32.totalorder %s106, %s107
      %p118 = scmp.eq.s32.totalorder %s22, 0
      %p119 = por %p117, %p118
      %p120 = scmp.ne.s32.totalorder %s106, %s107
      %p121 = scmp.eq.s32.totalorder %s23, 1
      %p122 = por %p120, %p121
      %p124 = scmp.ne.s32.totalorder %s107, %s123
      %p125 = scmp.eq.s32.totalorder %s23, 0
      %p126 = por %p124, %p125
      %p127 = scmp.le.s32.totalorder 1, %s17
      %p128 = scmp.lt.s32.totalorder %s17, 3
      %p129 = pnand %p127, %p128
      %p130 = pneg %p129
      // Predicated region
      $region9: #{tpu_custom_call.1} parent=5 // pred_check
        _
      $region10: #{tpu_custom_call.1} parent=5 // pred_check_branch
        %132 = sbr.rel (%p129) target = $region12
      $region11: #{tpu_custom_call.1} parent=5 // pred_region
        %s133 = ssub.s32 %s17, 1
      $region12: #{tpu_custom_call.1} parent=5 // pred_fallthru
        _
      %p134 = scmp.lt.s32.totalorder %s17, 2
      // Predicated region
      $region13: #{tpu_custom_call.1} parent=5 // pred_check
        %p135 = pneg %p134
      $region14: #{tpu_custom_call.1} parent=5 // pred_check_branch
        %137 = sbr.rel (%p135) target = $region16
      $region15: #{tpu_custom_call.1} parent=5 // pred_region
        // Predicated region
        $region17: #{tpu_custom_call.1} parent=15 // pred_check
          %p138 = pneg %p55
        $region18: #{tpu_custom_call.1} parent=15 // pred_check_branch
          %140 = sbr.rel (%p138) target = $region20
        $region19: #{tpu_custom_call.1} parent=15 // pred_region
          %s141 = sand.u32 %s45, 1
          %s142 = scalar_lea.sflag [#allocation3], %s141
          %s143 = sand.u32 %s45, 1
          %s144 = smul.addr %s143, 16
          %s145 = scalar_lea.vmem [#allocation2], %s144
          %s146 = sadd.s32 %s24, %s25
          %p147 = scmp.lt.s32.totalorder %s146, 0
          %s148 = scalar_select %p147, %s146, 0
          %s149 = smul.u32 2, %s148
          %151 = vsyncadd %s142, 0
          %s152 = smul.addr %s149, 8
          %s153 = scalar_lea.hbm %s0, %s152
          %s154 = sshll.u32 %s153, 4
          %s155 = int_to_ptr.hbm [resolvable:$true] %s154
          %s156 = sshll.u32 %s145, 4
          %s157 = int_to_ptr.vmem [resolvable:$true] %s156
          %162 = dma.hbm_to_vmem [thread:$0]  %s155, 256, %s157, %s142, 128, 128, 8
        $region20: #{tpu_custom_call.1} parent=15 // pred_fallthru
          _
        // Predicated region
        $region21: #{tpu_custom_call.1} parent=15 // pred_check
          %p163 = pneg %p87
        $region22: #{tpu_custom_call.1} parent=15 // pred_check_branch
          %165 = sbr.rel (%p163) target = $region24
        $region23: #{tpu_custom_call.1} parent=15 // pred_region
          %s166 = sand.u32 %s77, 1
          %s167 = scalar_lea.sflag [#allocation6], %s166
          %s168 = sand.u32 %s77, 1
          %s169 = smul.addr %s168, 16
          %s170 = scalar_lea.vmem [#allocation5], %s169
          %s171 = sadd.s32 %s24, %s25
          %p172 = scmp.lt.s32.totalorder %s171, 0
          %s173 = scalar_select %p172, %s171, 0
          %s174 = smul.u32 2, %s173
          %176 = vsyncadd %s167, 0
          %s177 = smul.addr %s174, 8
          %s178 = scalar_lea.hbm %s1, %s177
          %s179 = sshll.u32 %s178, 4
          %s180 = int_to_ptr.hbm [resolvable:$true] %s179
          %s181 = sshll.u32 %s170, 4
          %s182 = int_to_ptr.vmem [resolvable:$true] %s181
          %187 = dma.hbm_to_vmem [thread:$0]  %s180, 256, %s182, %s167, 128, 128, 8
        $region24: #{tpu_custom_call.1} parent=15 // pred_fallthru
          _
      $region16: #{tpu_custom_call.1} parent=5 // pred_fallthru
        _
      %p188 = scmp.le.s32.totalorder 1, %s17
      %p189 = scmp.lt.s32.totalorder %s17, 3
      %p190 = pnand %p188, %p189
      %p191 = pneg %p190
      // Predicated region
      $region25: #{tpu_custom_call.1} parent=5 // pred_check
        _
      $region26: #{tpu_custom_call.1} parent=5 // pred_check_branch
        %193 = sbr.rel (%p190) target = $region28
      $region27: #{tpu_custom_call.1} parent=5 // pred_region
        %s194 = ssub.s32 %s17, 1
        %s195 = sand.u32 %s48, 1
        %s196 = scalar_lea.sflag [#allocation3], %s195
        %s197 = sand.u32 %s48, 1
        %s198 = smul.addr %s197, 16
        %s199 = scalar_lea.vmem [#allocation2], %s198
        // Predicated region
        $region29: #{tpu_custom_call.1} parent=27 // pred_check
          %p200 = pneg %p61
        $region30: #{tpu_custom_call.1} parent=27 // pred_check_branch
          %202 = sbr.rel (%p200) target = $region32
        $region31: #{tpu_custom_call.1} parent=27 // pred_region
          %204 = dma.done %s196, 256
        $region32: #{tpu_custom_call.1} parent=27 // pred_fallthru
          _
        %s205 = sand.u32 %s80, 1
        %s206 = scalar_lea.sflag [#allocation6], %s205
        %s207 = sand.u32 %s80, 1
        %s208 = smul.addr %s207, 16
        %s209 = scalar_lea.vmem [#allocation5], %s208
        // Predicated region
        $region33: #{tpu_custom_call.1} parent=27 // pred_check
          %p210 = pneg %p93
        $region34: #{tpu_custom_call.1} parent=27 // pred_check_branch
          %212 = sbr.rel (%p210) target = $region36
        $region35: #{tpu_custom_call.1} parent=27 // pred_region
          %214 = dma.done %s206, 256
        $region36: #{tpu_custom_call.1} parent=27 // pred_fallthru
          _
        %s215 = sand.u32 %s48, 1
        %s216 = scalar_lea.sflag [#allocation3], %s215
        %s217 = sand.u32 %s48, 1
        %s218 = smul.addr %s217, 16
        %s219 = scalar_lea.vmem [#allocation2], %s218
        %p220 = pneg %p61
        %p221 = pneg %p58
        %s222 = sand.u32 %s80, 1
        %s223 = scalar_lea.sflag [#allocation6], %s222
        %s224 = sand.u32 %s80, 1
        %s225 = smul.addr %s224, 16
        %s226 = scalar_lea.vmem [#allocation5], %s225
        %p227 = pneg %p93
        %p228 = pneg %p90
        %p229 = pneg %p119
        %p230 = pneg %p116
        %s231 = sand.u32 %s106, 1
        %s232 = scalar_lea.sflag [#allocation4], %s231
        %s233 = sand.u32 %s106, 1
        %s234 = smul.addr %s233, 24
        %s235 = scalar_lea.vmem [#allocation7], %s234
        %s236 = sadd.s32 %s26, %s27
        %p237 = scmp.lt.s32.totalorder %s236, 0
        %s238 = scalar_select %p237, %s236, 0
        %s239 = smul.u32 2, %s238
        %s240 = sadd.s32 %s26, %s27
        %p241 = scmp.lt.s32.totalorder %s240, 0
        %s242 = scalar_select %p241, %s240, 0
        %s243 = smul.u32 2, %s242
        %p244 = scmp.eq.s32.totalorder %s27, 0
        // Predicated region
        $region37: #{tpu_custom_call.1} parent=27 // pred_check
          %p245 = pneg %p244
        $region38: #{tpu_custom_call.1} parent=27 // pred_check_branch
          %247 = sbr.rel (%p245) target = $region40
        $region39: #{tpu_custom_call.1} parent=27 // pred_region
          %248 = vst [vmem:[%s235] sm:$0xff] 0.0
          %249 = vst [vmem:[%s235 + $0x8] sm:$0xff] 0.0
          %250 = vst [vmem:[%s235 + $0x10] sm:$0xff] 0.0
        $region40: #{tpu_custom_call.1} parent=27 // pred_fallthru
          _
        %v251 = vld [vmem:[%s199] sm:$0xff]
        %v252 = vld [vmem:[%s199 + $0x8] sm:$0xff]
        %v253 = vld [vmem:[%s209] sm:$0xff]
        %v254 = vld [vmem:[%s209 + $0x8] sm:$0xff]
        %s255 = sadd.s32 %s26, %s27
        %s256 = smul.u32 %s255, 16
        %v257 = vlaneseq
        %v258 = vshrl.u32 %v257, 7
        %v259 = vadd.s32 %v258, 8
        %v260 = vstv %s256
        %v261 = vadd.s32 %v260, %v258
        %v262 = vadd.s32 %v260, %v259
        %v263 = vlaneseq
        %v264 = vand.u32 %v263, 127
        %vm265 = vcmp.lt.s32.totalorder %v261, 15
        %vm266 = vcmp.lt.s32.totalorder %v262, 15
        %vm267 = vcmp.eq.s32.totalorder %v261, 15
        %vm268 = vcmp.eq.s32.totalorder %v262, 15
        %vm269 = vcmp.lt.s32.totalorder %v264, 128
        %vm270 = vmand %vm267, %vm269
        %vm271 = vmand %vm268, %vm269
        %vm272 = vmor %vm265, %vm270
        %vm273 = vmor %vm266, %vm271
        %v274 = vsel %vm272, %v251, 0.0
        %v275 = vsel %vm273, %v252, 0.0
        %v276 = vsel %vm272, %v253, 0.0
        %v277 = vsel %vm273, %v254, 0.0
        %v278 = vld [vmem:[%s235] sm:$0xff]
        %v279 = vmul.f32 %v274, %v276
        %v280 = vmul.f32 %v275, %v277
        %v281 = vadd.f32 %v279, %v280
        %v282 = vadd.f32 %v278, %v281
        %283 = vst [vmem:[%s235] sm:$0xff] %v282
        %s284 = scalar_lea.vmem %s235, 8 [#allocation7]
        %v285 = vld [vmem:[%s284] sm:$0xff]
        %v286 = vmul.f32 %v274, %v274
        %v287 = vmul.f32 %v275, %v275
        %v288 = vadd.f32 %v286, %v287
        %v289 = vadd.f32 %v285, %v288
        %290 = vst [vmem:[%s284] sm:$0xff] %v289
        %s291 = scalar_lea.vmem %s235, 16 [#allocation7]
        %v292 = vld [vmem:[%s291] sm:$0xff]
        %v293 = vmul.f32 %v276, %v276
        %v294 = vmul.f32 %v277, %v277
        %v295 = vadd.f32 %v293, %v294
        %v296 = vadd.f32 %v292, %v295
        %297 = vst [vmem:[%s291] sm:$0xff] %v296
        %s298 = sand.u32 %s106, 1
        %s299 = scalar_lea.sflag [#allocation4], %s298
        %s300 = sand.u32 %s106, 1
        %s301 = smul.addr %s300, 24
        %s302 = scalar_lea.vmem [#allocation7], %s301
        // Predicated region
        $region41: #{tpu_custom_call.1} parent=27 // pred_check
          %p303 = pneg %p116
        $region42: #{tpu_custom_call.1} parent=27 // pred_check_branch
          %305 = sbr.rel (%p303) target = $region44
        $region43: #{tpu_custom_call.1} parent=27 // pred_region
          %307 = vsyncadd %s299, 0
          %s308 = smul.addr %s26, 3
          %s309 = smul.addr %s308, 8
          %s310 = scalar_lea.hbm %s2, %s309
          %s311 = sshll.u32 %s302, 4
          %s312 = int_to_ptr.vmem [resolvable:$true] %s311
          %s313 = sshll.u32 %s310, 4
          %s314 = int_to_ptr.hbm [resolvable:$true] %s313
          %319 = dma.vmem_to_hbm [thread:$0]  %s312, 384, %s314, %s299, 128, 128, 8
        $region44: #{tpu_custom_call.1} parent=27 // pred_fallthru
          _
      $region28: #{tpu_custom_call.1} parent=5 // pred_fallthru
        _
      %p320 = scmp.le.s32.totalorder 2, %s17
      // Predicated region
      $region45: #{tpu_custom_call.1} parent=5 // pred_check
        %p321 = pneg %p320
      $region46: #{tpu_custom_call.1} parent=5 // pred_check_branch
        %323 = sbr.rel (%p321) target = $region48
      $region47: #{tpu_custom_call.1} parent=5 // pred_region
        %s324 = ssub.s32 %s17, 2
        // Predicated region
        $region49: #{tpu_custom_call.1} parent=47 // pred_check
          %p325 = pneg %p122
        $region50: #{tpu_custom_call.1} parent=47 // pred_check_branch
          %327 = sbr.rel (%p325) target = $region52
        $region51: #{tpu_custom_call.1} parent=47 // pred_region
          %s328 = sand.u32 %s107, 1
          %s329 = scalar_lea.sflag [#allocation4], %s328
          %s330 = sand.u32 %s107, 1
          %s331 = smul.addr %s330, 24
          %s332 = scalar_lea.vmem [#allocation7], %s331
          %334 = dma.done %s329, 384
        $region52: #{tpu_custom_call.1} parent=47 // pred_fallthru
          _
      $region48: #{tpu_custom_call.1} parent=5 // pred_fallthru
        _
    $region6: #{tpu_custom_call.1} parent=1 // loop_footer
      %s21 = sadd.s32 1, %s17
    $region7: #{tpu_custom_call.1} parent=1 // loop_footer_branch
      %16 = sbr.rel target = $region3
    $region8: #{tpu_custom_call.1} parent=1 // loop_exit
      _
    %335 = vsyncpa [#allocation3], 1
    %s336 = scalar_lea.sflag [#allocation3], 1
    %337 = vsyncpa %s336, 1
    %338 = vsyncpa [#allocation6], 1
    %s339 = scalar_lea.sflag [#allocation6], 1
    %340 = vsyncpa %s339, 1
    %341 = vsyncpa [#allocation4], 1
    %s342 = scalar_lea.sflag [#allocation4], 1
    %343 = vsyncpa %s342, 1

</llo_original>
